<compile_context>
chip_gen: v5e
topology: v5e:2x2
jax: 0.10.0
libtpu: 0.0.40
codegen_flags: <defaults>
</compile_context>

<pallas_src>
import functools
import math

import jax
import jax.numpy as jnp
from jax.experimental import pallas as pl
from jax.experimental.pallas import tpu as pltpu


def _round_up(x, m):
    return ((x + m - 1) // m) * m


# ----------------------------------------------------------------------------
# Pallas kernel: one (G-tile, E-tile) grid step of the fused scatter + GIN MLP.
# ----------------------------------------------------------------------------
def _mega_agg_kernel(inv_ref, rhs_ref, w1_ref, b1_ref, w2_ref, b2_ref,
                     scat_ref, attr_out_ref):
    e_step = pl.program_id(1)
    tg = scat_ref.shape[0]
    te = rhs_ref.shape[0]

    # scat_ref's block index is constant along the E (reduction) axis, so it stays
    # resident in VMEM across the whole reduction and doubles as the f32 accumulator.
    @pl.when(e_step == 0)
    def _init():
        scat_ref[...] = jnp.zeros_like(scat_ref)

    # Build the [TG, TE] one-hot scatter matrix for this tile on the fly.
    # Padded edges carry inv == -1 and never match a group id.  0/1 are exact in bf16.
    inv = inv_ref[...]                                                   # [1, TE] int32
    gids = pl.program_id(0) * tg + jax.lax.broadcasted_iota(jnp.int32, (tg, te), 0)
    onehot = jnp.where(inv == gids, 1.0, 0.0).astype(jnp.bfloat16)       # [TG, TE]

    # ONE fused bf16 MXU pass (f32 accumulation) produces, per group:
    #   lanes [0:H)      scatter-sum of edge_attr
    #   lanes [H:H+2)    scatter-sum of edge_index // 256   (hi base-256 digit)
    #   lanes [H+2:H+4)  scatter-sum of edge_index %  256   (lo base-256 digit)
    #   lane  [H+4]      group edge count
    scat_ref[...] += jnp.dot(onehot, rhs_ref[...], preferred_element_type=jnp.float32)

    # GIN MLP (Linear -> ReLU -> Linear) once per G tile after the E reduction.
    # Kept in f32: its flops are O(TG*H^2), negligible vs the O(TG*E*W) scatter.
    # Rows >= H of w1 are zero-padded, so the ei/count lanes never leak into the MLP.
    @pl.when(e_step == pl.num_programs(1) - 1)
    def _finalize():
        acc = scat_ref[...]
        h1 = jnp.dot(acc, w1_ref[...], preferred_element_type=jnp.float32) + b1_ref[...]
        h1 = jnp.maximum(h1, 0.0)
        attr_out_ref[...] = (jnp.dot(h1, w2_ref[...], preferred_element_type=jnp.float32)
                             + b2_ref[...])


# ----------------------------------------------------------------------------
# jit-compiled core (num_groups / tile sizes are static).
# ----------------------------------------------------------------------------
@functools.partial(jax.jit, static_argnames=("num_groups", "tg", "te"))
def _mega_agg_jit(edge_index, edge_attr, simp_edge_batch, params,
                  *, num_groups, tg=128, te=512):
    w1, b1, w2, b2 = params
    E, H = edge_attr.shape
    G = int(num_groups)

    # torch.unique(..., return_inverse=True) equivalent, jit-compatible because the
    # number of groups is static: sorted unique values + searchsorted = inverse indices.
    batch = simp_edge_batch.reshape(-1).astype(jnp.int32)
    uniq = jnp.unique(batch, size=G, fill_value=jnp.iinfo(jnp.int32).max)
    inv = jnp.searchsorted(uniq, batch).astype(jnp.int32)

    # --- tile sizes & padded shapes (lane width = 128) ---
    tg = max(128, min(int(tg), _round_up(G, 128)))      # keep the MXU M-dim full
    te = max(128, min(int(te), _round_up(E, 128)))
    assert tg % 8 == 0 and te % 128 == 0
    g_pad = _round_up(G, tg)
    e_pad = _round_up(E, te)
    h_pad = _round_up(H, 128)
    w = H + 5                                           # attr | ei_hi(2) | ei_lo(2) | count
    w_pad = _round_up(w, 128)

    # --- fused RHS: [edge_attr | ei_hi | ei_lo | ones] -> bf16 ---
    ei_t = edge_index.T.astype(jnp.int32)               # [E, 2]
    ei_hi = (ei_t // 256).astype(jnp.float32)           # exact in bf16 for ids < 65536
    ei_lo = (ei_t % 256).astype(jnp.float32)
    ones = jnp.ones((E, 1), jnp.float32)
    rhs = jnp.concatenate([edge_attr.astype(jnp.float32), ei_hi, ei_lo, ones], axis=1)
    rhs = jnp.pad(rhs, ((0, e_pad - E), (0, w_pad - w))).astype(jnp.bfloat16)

    inv_pad = jnp.full((1, e_pad), -1, jnp.int32).at[0, :E].set(inv)

    # --- MLP params, zero-padded so the ei/count lanes cannot leak into the MLP ---
    w1_p = jnp.zeros((w_pad, h_pad), jnp.float32).at[:H, :H].set(w1)
    w2_p = jnp.zeros((h_pad, h_pad), jnp.float32).at[:H, :H].set(w2)
    b1_p = jnp.zeros((1, h_pad), jnp.float32).at[0, :H].set(b1)
    b2_p = jnp.zeros((1, h_pad), jnp.float32).at[0, :H].set(b2)

    grid = (g_pad // tg, e_pad // te)

    # VMEM budget from the tile arithmetic (double-buffered inputs + resident outputs +
    # one-hot temporaries), 2x headroom, capped so it also fits v7x (64 MiB physical).
    tile_bytes = (
        2 * (te * w_pad * 2 + te * 4)                     # rhs + inv tiles, double-buffered
        + 2 * (w_pad * h_pad * 4 + h_pad * h_pad * 4 + 2 * h_pad * 4)   # weights / biases
        + tg * w_pad * 4 + tg * h_pad * 4                 # resident output blocks
        + 2 * tg * te * 2                                 # one-hot temporaries
    )
    vmem_limit = int(min(max(2 * tile_bytes, 16 << 20), 48 << 20))

    scat_out, attr_out = pl.pallas_call(
        _mega_agg_kernel,
        out_shape=(
            jax.ShapeDtypeStruct((g_pad, w_pad), jnp.float32),
            jax.ShapeDtypeStruct((g_pad, h_pad), jnp.float32),
        ),
        grid_spec=pltpu.PrefetchScalarGridSpec(
            num_scalar_prefetch=0,
            grid=grid,
            in_specs=[
                pl.BlockSpec((1, te), lambda g, e: (0, e)),         # inv tile
                pl.BlockSpec((te, w_pad), lambda g, e: (e, 0)),     # fused RHS tile
                pl.BlockSpec((w_pad, h_pad), lambda g, e: (0, 0)),  # w1 (fused/padded)
                pl.BlockSpec((1, h_pad), lambda g, e: (0, 0)),      # b1
                pl.BlockSpec((h_pad, h_pad), lambda g, e: (0, 0)),  # w2
                pl.BlockSpec((1, h_pad), lambda g, e: (0, 0)),      # b2
            ],
            out_specs=(
                pl.BlockSpec((tg, w_pad), lambda g, e: (g, 0)),     # fused scatter sums
                pl.BlockSpec((tg, h_pad), lambda g, e: (g, 0)),     # MLP output
            ),
        ),
        compiler_params=pltpu.CompilerParams(
            dimension_semantics=("parallel", "arbitrary"),
            vmem_limit_bytes=vmem_limit,
        ),
    )(inv_pad, rhs, w1_p, b1_p, w2_p, b2_p)

    # Tiny [G, 5] post-processing kept outside the kernel (no sub-128-lane stores there):
    # recombine the base-256 digits and apply scatter-mean's true division.
    scat = scat_out[:G]
    ei_sum = 256.0 * scat[:, H:H + 2] + scat[:, H + 2:H + 4]        # [G, 2], exact
    counts = jnp.maximum(scat[:, H + 4:H + 5], 1.0)                 # [G, 1]
    new_edge_index = (ei_sum / counts).T                            # [2, G] float32
    new_edge_attr = attr_out[:G, :H]                                # [G, H] float32
    return new_edge_index, new_edge_attr, inv


def multi_edge_agg_forward(edge_index, edge_attr, simp_edge_batch, params,
                           *, num_groups=None, tg=128, te=512):
    """Forward of MultiEdgeAggModule(agg_type='gin').

    Pass `num_groups` (the number of unique values in simp_edge_batch) if known to keep
    the whole call inside jax.jit with no per-call device->host round-trip.
    """
    if num_groups is None:
        # TODO(synk): callers with a statically known group count should pass num_groups
        # to avoid this one-time device->host sync (torch.unique has no sized equivalent).
        num_groups = int(jnp.unique(jnp.asarray(simp_edge_batch)).shape[0])
    return _mega_agg_jit(edge_index, edge_attr, simp_edge_batch, params,
                         num_groups=int(num_groups), tg=int(tg), te=int(te))


# ----------------------------------------------------------------------------
# Pure-JAX reference (correctness check only)
# ----------------------------------------------------------------------------
def _reference(edge_index, edge_attr, simp_edge_batch, params):
    w1, b1, w2, b2 = params
    uniq, inv = jnp.unique(simp_edge_batch, return_inverse=True)
    inv = inv.reshape(-1)
    G = int(uniq.shape[0])
    counts = jnp.maximum(jnp.zeros((G,), jnp.float32).at[inv].add(1.0), 1.0)
    ei_sum = jnp.zeros((G, 2), jnp.float32).at[inv].add(edge_index.astype(jnp.float32).T)
    new_ei = (ei_sum / counts[:, None]).T
    h = jnp.zeros((G, edge_attr.shape[1]), jnp.float32).at[inv].add(
        edge_attr.astype(jnp.float32))
    h1 = jnp.maximum(h @ w1 + b1, 0.0)
    return new_ei, h1 @ w2 + b2, inv


def _make_inputs(key, E, H, n_nodes, n_groups):
    k_ei, k_attr, k_batch, k_w1, k_b1, k_w2, k_b2 = jax.random.split(key, 7)
    edge_index = jax.random.randint(k_ei, (2, E), 0, n_nodes, dtype=jnp.int32)
    edge_attr = jax.random.normal(k_attr, (E, H), dtype=jnp.float32)
    simp_edge_batch = jax.random.randint(k_batch, (E,), 0, n_groups, dtype=jnp.int32)
    scale = 1.0 / math.sqrt(H)
    w1 = jax.random.normal(k_w1, (H, H), dtype=jnp.float32) * scale
    b1 = jax.random.normal(k_b1, (H,), dtype=jnp.float32) * scale
    w2 = jax.random.normal(k_w2, (H, H), dtype=jnp.float32) * scale
    b2 = jax.random.normal(k_b2, (H,), dtype=jnp.float32) * scale
    return edge_index, edge_attr, simp_edge_batch, (w1, b1, w2, b2)


def _check(edge_index, edge_attr, simp_edge_batch, params, *, tg, te):
    new_ei, new_attr, inv = multi_edge_agg_forward(
        edge_index, edge_attr, simp_edge_batch, params, tg=tg, te=te)
    jax.block_until_ready((new_ei, new_attr, inv))

    ref_ei, ref_attr, ref_inv = _reference(edge_index, edge_attr, simp_edge_batch, params)
    # Kernel-precision reference: edge_attr rides the MXU as bf16 (f32 accumulation).
    attr_q = edge_attr.astype(jnp.bfloat16).astype(jnp.float32)
    _, ref_attr_q, _ = _reference(edge_index, attr_q, simp_edge_batch, params)

    assert new_ei.shape == ref_ei.shape and new_attr.shape == ref_attr.shape
    assert jnp.array_equal(inv, ref_inv)
    # edge_index mean path is exact (base-256 digits exact in bf16, f32 accumulation).
    assert jnp.allclose(new_ei, ref_ei, atol=1e-5, rtol=0.0)
    # Matches the mixed-precision math the kernel actually performs.
    assert jnp.allclose(new_attr, ref_attr_q, atol=5e-3, rtol=5e-3)
    # Loose check vs pure-f32 module math (bf16 edge_attr quantization is the only gap).
    assert jnp.allclose(new_attr, ref_attr, atol=6e-2, rtol=6e-2)


if __name__ == "__main__":
    key = jax.random.PRNGKey(0)
    k_small, k_big = jax.random.split(key)

    # Small shapes consistent with the module (single-tile grid).
    ei_s, attr_s, batch_s, params_s = _make_inputs(
        k_small, E=16, H=32, n_nodes=12, n_groups=6)
    _check(ei_s, attr_s, batch_s, params_s, tg=128, te=512)

    # Moderately larger case exercising the multi-tile (G-parallel, E-reduction) grid
    # and node ids > 256 (base-256 hi/lo split).
    ei_b, attr_b, batch_b, params_b = _make_inputs(
        k_big, E=1000, H=32, n_nodes=5000, n_groups=300)
    _check(ei_b, attr_b, batch_b, params_b, tg=128, te=128)

    print("KERNEL_OK")
</pallas_src>

<mosaic_0001>
module attributes {stable_mosaic.version = 11 : i64} {
  func.func @_mega_agg_kernel(%arg0: i32, %arg1: i32, %arg2: memref<1x128xi32, #tpu.memory_space<vmem>>, %arg3: memref<128x128xbf16, #tpu.memory_space<vmem>>, %arg4: memref<128x128xf32, #tpu.memory_space<vmem>>, %arg5: memref<1x128xf32, #tpu.memory_space<vmem>>, %arg6: memref<128x128xf32, #tpu.memory_space<vmem>>, %arg7: memref<1x128xf32, #tpu.memory_space<vmem>>, %arg8: memref<128x128xf32, #tpu.memory_space<vmem>>, %arg9: memref<128x128xf32, #tpu.memory_space<vmem>>) attributes {dimension_semantics = [#tpu.dimension_semantics<parallel>, #tpu.dimension_semantics<arbitrary>], iteration_bounds = array<i64: 1, 1>, scalar_prefetch = 0 : i64, scratch_operands = 0 : i64, tpu.core_type = #tpu.core_type<tc>, window_params = [{transform_indices = @transform_0, window_bounds = array<i64: 1, 128>}, {transform_indices = @transform_1, window_bounds = array<i64: 128, 128>}, {pipeline_mode = #tpu.pipeline_mode<synchronous>, transform_indices = @transform_2, window_bounds = array<i64: 128, 128>}, {pipeline_mode = #tpu.pipeline_mode<synchronous>, transform_indices = @transform_3, window_bounds = array<i64: 1, 128>}, {pipeline_mode = #tpu.pipeline_mode<synchronous>, transform_indices = @transform_4, window_bounds = array<i64: 128, 128>}, {pipeline_mode = #tpu.pipeline_mode<synchronous>, transform_indices = @transform_5, window_bounds = array<i64: 1, 128>}, {transform_indices = @transform_6, window_bounds = array<i64: 128, 128>}, {transform_indices = @transform_7, window_bounds = array<i64: 128, 128>}]} {
    %c0_i32 = arith.constant 0 : i32
    %0 = arith.cmpi eq, %arg1, %c0_i32 : i32
    %1 = arith.extui %0 : i1 to i32
    %c0_i32_0 = arith.constant 0 : i32
    %2 = arith.cmpi ne, %1, %c0_i32_0 : i32
    scf.if %2 {
      %cst_12 = arith.constant 0.000000e+00 : f32
      %22 = vector.broadcast %cst_12 : f32 to vector<128x128xf32>
      %c0_13 = arith.constant 0 : index
      %c0_14 = arith.constant 0 : index
      %23 = vector.load %arg8[%c0_13, %c0_14] : memref<128x128xf32, #tpu.memory_space<vmem>>, vector<128x128xf32>
      tpu.vector_store %arg8[%c0_13, %c0_14], %22 {strides = array<i32>} : memref<128x128xf32, #tpu.memory_space<vmem>>, vector<128x128xf32>,
    } else {
    }
    %c0 = arith.constant 0 : index
    %c0_1 = arith.constant 0 : index
    %3 = vector.load %arg2[%c0, %c0_1] : memref<1x128xi32, #tpu.memory_space<vmem>>, vector<1x128xi32>
    %c128_i32 = arith.constant 128 : i32
    %4 = arith.muli %arg0, %c128_i32 : i32
    %5 = tpu.iota {dimensions = array<i32: 0>} : vector<128x128xi32>
    %6 = vector.broadcast %4 : i32 to vector<128x128xi32>
    %7 = arith.addi %6, %5 : vector<128x128xi32>
    %8 = vector.broadcast %3 : vector<1x128xi32> to vector<128x128xi32>
    %9 = arith.cmpi eq, %8, %7 : vector<128x128xi32>
    %cst = arith.constant 1.000000e+00 : f32
    %cst_2 = arith.constant 0.000000e+00 : f32
    %10 = vector.broadcast %cst : f32 to vector<128x128xf32>
    %11 = vector.broadcast %cst_2 : f32 to vector<128x128xf32>
    %12 = arith.select %9, %10, %11 : vector<128x128xi1>, vector<128x128xf32>
    %13 = arith.truncf %12 : vector<128x128xf32> to vector<128x128xbf16>
    %c0_3 = arith.constant 0 : index
    %c0_4 = arith.constant 0 : index
    %14 = vector.load %arg8[%c0_3, %c0_4] : memref<128x128xf32, #tpu.memory_space<vmem>>, vector<128x128xf32>
    %c0_5 = arith.constant 0 : index
    %c0_6 = arith.constant 0 : index
    %15 = vector.load %arg3[%c0_5, %c0_6] : memref<128x128xbf16, #tpu.memory_space<vmem>>, vector<128x128xbf16>
    %cst_7 = arith.constant dense<0.000000e+00> : vector<128x128xf32>
    %16 = tpu.matmul %13, %15, %cst_7 {dimension_numbers = #tpu.dot_dimension_numbers<[1], [0], [0], [1], [0, 0, 1, 1], [], []>} : vector<128x128xbf16>, vector<128x128xbf16>, vector<128x128xf32> -> vector<128x128xf32>
    %17 = arith.addf %14, %16 : vector<128x128xf32>
    %c0_8 = arith.constant 0 : index
    %c0_9 = arith.constant 0 : index
    %18 = vector.load %arg8[%c0_8, %c0_9] : memref<128x128xf32, #tpu.memory_space<vmem>>, vector<128x128xf32>
    tpu.vector_store %arg8[%c0_8, %c0_9], %17 {strides = array<i32>} : memref<128x128xf32, #tpu.memory_space<vmem>>, vector<128x128xf32>,
    %c0_i32_10 = arith.constant 0 : i32
    %19 = arith.cmpi eq, %arg1, %c0_i32_10 : i32
    %20 = arith.extui %19 : i1 to i32
    %c0_i32_11 = arith.constant 0 : i32
    %21 = arith.cmpi ne, %20, %c0_i32_11 : i32
    scf.if %21 {
      %c0_12 = arith.constant 0 : index
      %c0_13 = arith.constant 0 : index
      %22 = vector.load %arg8[%c0_12, %c0_13] : memref<128x128xf32, #tpu.memory_space<vmem>>, vector<128x128xf32>
      %c0_14 = arith.constant 0 : index
      %c0_15 = arith.constant 0 : index
      %23 = vector.load %arg4[%c0_14, %c0_15] : memref<128x128xf32, #tpu.memory_space<vmem>>, vector<128x128xf32>
      %cst_16 = arith.constant dense<0.000000e+00> : vector<128x128xf32>
      %24 = tpu.matmul %22, %23, %cst_16 {dimension_numbers = #tpu.dot_dimension_numbers<[1], [0], [0], [1], [0, 0, 1, 1], [], []>} : vector<128x128xf32>, vector<128x128xf32>, vector<128x128xf32> -> vector<128x128xf32>
      %c0_17 = arith.constant 0 : index
      %c0_18 = arith.constant 0 : index
      %25 = vector.load %arg5[%c0_17, %c0_18] : memref<1x128xf32, #tpu.memory_space<vmem>>, vector<1x128xf32>
      %26 = vector.broadcast %25 : vector<1x128xf32> to vector<128x128xf32>
      %27 = arith.addf %24, %26 : vector<128x128xf32>
      %cst_19 = arith.constant 0.000000e+00 : f32
      %28 = vector.broadcast %cst_19 : f32 to vector<128x128xf32>
      %29 = arith.maximumf %27, %28 : vector<128x128xf32>
      %c0_20 = arith.constant 0 : index
      %c0_21 = arith.constant 0 : index
      %30 = vector.load %arg6[%c0_20, %c0_21] : memref<128x128xf32, #tpu.memory_space<vmem>>, vector<128x128xf32>
      %cst_22 = arith.constant dense<0.000000e+00> : vector<128x128xf32>
      %31 = tpu.matmul %29, %30, %cst_22 {dimension_numbers = #tpu.dot_dimension_numbers<[1], [0], [0], [1], [0, 0, 1, 1], [], []>} : vector<128x128xf32>, vector<128x128xf32>, vector<128x128xf32> -> vector<128x128xf32>
      %c0_23 = arith.constant 0 : index
      %c0_24 = arith.constant 0 : index
      %32 = vector.load %arg7[%c0_23, %c0_24] : memref<1x128xf32, #tpu.memory_space<vmem>>, vector<1x128xf32>
      %33 = vector.broadcast %32 : vector<1x128xf32> to vector<128x128xf32>
      %34 = arith.addf %31, %33 : vector<128x128xf32>
      %c0_25 = arith.constant 0 : index
      %c0_26 = arith.constant 0 : index
      %35 = vector.load %arg9[%c0_25, %c0_26] : memref<128x128xf32, #tpu.memory_space<vmem>>, vector<128x128xf32>
      tpu.vector_store %arg9[%c0_25, %c0_26], %34 {strides = array<i32>} : memref<128x128xf32, #tpu.memory_space<vmem>>, vector<128x128xf32>,
    } else {
    }
    return
  }
  func.func @transform_0(%arg0: i32, %arg1: i32) -> (i32, i32) {
    %c0_i32 = arith.constant 0 : i32
    %c0_i32_0 = arith.constant 0 : i32
    return %c0_i32, %arg1 : i32, i32
  }
  func.func @transform_1(%arg0: i32, %arg1: i32) -> (i32, i32) {
    %c0_i32 = arith.constant 0 : i32
    %c0_i32_0 = arith.constant 0 : i32
    return %arg1, %c0_i32 : i32, i32
  }
  func.func @transform_2(%arg0: i32, %arg1: i32) -> (i32, i32) {
    %c0_i32 = arith.constant 0 : i32
    %c0_i32_0 = arith.constant 0 : i32
    %c0_i32_1 = arith.constant 0 : i32
    return %c0_i32, %c0_i32_0 : i32, i32
  }
  func.func @transform_3(%arg0: i32, %arg1: i32) -> (i32, i32) {
    %c0_i32 = arith.constant 0 : i32
    %c0_i32_0 = arith.constant 0 : i32
    %c0_i32_1 = arith.constant 0 : i32
    return %c0_i32, %c0_i32_0 : i32, i32
  }
  func.func @transform_4(%arg0: i32, %arg1: i32) -> (i32, i32) {
    %c0_i32 = arith.constant 0 : i32
    %c0_i32_0 = arith.constant 0 : i32
    %c0_i32_1 = arith.constant 0 : i32
    return %c0_i32, %c0_i32_0 : i32, i32
  }
  func.func @transform_5(%arg0: i32, %arg1: i32) -> (i32, i32) {
    %c0_i32 = arith.constant 0 : i32
    %c0_i32_0 = arith.constant 0 : i32
    %c0_i32_1 = arith.constant 0 : i32
    return %c0_i32, %c0_i32_0 : i32, i32
  }
  func.func @transform_6(%arg0: i32, %arg1: i32) -> (i32, i32) {
    %c0_i32 = arith.constant 0 : i32
    %c0_i32_0 = arith.constant 0 : i32
    return %arg0, %c0_i32 : i32, i32
  }
  func.func @transform_7(%arg0: i32, %arg1: i32) -> (i32, i32) {
    %c0_i32 = arith.constant 0 : i32
    %c0_i32_0 = arith.constant 0 : i32
    return %arg0, %c0_i32 : i32, i32
  }
}

</mosaic_0001>

<llo_original>
// kernel: custom-call.1
$region0: #{custom-call.1}
  %s0 = inlined_call_operand.vmem [shape: u32[16], index: 0, kind: output, shape index: {}]

// kernel: _mega_agg_jit.1
$region0: #{_mega_agg_jit.1}
  #allocation0 [shape = 'u32[]', space=smem, size = 0x4, offset = 0x4, fixed_abs, tag = 'smem constant byte address 0x4 - core index']
  #allocation1 [shape = 'u32[72,128]{1,0:T(1,128)}', space=vmem, size = 0x9000, scoped, tag = 'internal scratch']
  %s0 = inlined_call_operand.vmem [shape: s32[1,128], index: 0, kind: input, shape index: {}]
  %s1 = inlined_call_operand.vmem [shape: bf16[128,128], index: 1, kind: input, shape index: {}]
  %s2 = inlined_call_operand.vmem [shape: f32[128,128], index: 2, kind: input, shape index: {}]
  %s3 = inlined_call_operand.vmem [shape: f32[1,128], index: 3, kind: input, shape index: {}]
  %s4 = inlined_call_operand.vmem [shape: f32[128,128], index: 4, kind: input, shape index: {}]
  %s5 = inlined_call_operand.vmem [shape: f32[1,128], index: 5, kind: input, shape index: {}]
  %s6 = inlined_call_operand.vmem [shape: f32[128,128], index: 6, kind: output, shape index: {0}]
  %s7 = inlined_call_operand.vmem [shape: f32[128,128], index: 7, kind: output, shape index: {1}]
  %8 = xla_tuple %s6, %s7
  %s9 = sld [smem:[#allocation0]]
  $region50: #{_mega_agg_jit.1} parent=0
    _
  %s11 = ssub.s32 1, %s9
  %s12 = scalar_select 0, %s11, %s9
  // Predicated region
  $region2: #{_mega_agg_jit.1} parent=0 // pred_check
    _
  $region3: #{_mega_agg_jit.1} parent=0 // pred_check_branch
    %14 = sbr.rel (0) target = $region5
  $region4: #{_mega_agg_jit.1} parent=0 // pred_region
    _
  $region5: #{_mega_agg_jit.1} parent=0 // pred_fallthru
    _
  // Predicated region
  $region6: #{_mega_agg_jit.1} parent=0 // pred_check
    _
  $region7: #{_mega_agg_jit.1} parent=0 // pred_check_branch
    %16 = sbr.rel (0) target = $region9
  $region8: #{_mega_agg_jit.1} parent=0 // pred_region
    _
  $region9: #{_mega_agg_jit.1} parent=0 // pred_fallthru
    _
  // Predicated region
  $region10: #{_mega_agg_jit.1} parent=0 // pred_check
    _
  $region11: #{_mega_agg_jit.1} parent=0 // pred_check_branch
    %18 = sbr.rel (0) target = $region13
  $region12: #{_mega_agg_jit.1} parent=0 // pred_region
    _
  $region13: #{_mega_agg_jit.1} parent=0 // pred_fallthru
    _
  // Predicated region
  $region14: #{_mega_agg_jit.1} parent=0 // pred_check
    _
  $region15: #{_mega_agg_jit.1} parent=0 // pred_check_branch
    %20 = sbr.rel (0) target = $region17
  $region16: #{_mega_agg_jit.1} parent=0 // pred_region
    _
  $region17: #{_mega_agg_jit.1} parent=0 // pred_fallthru
    _
  // Predicated region
  $region18: #{_mega_agg_jit.1} parent=0 // pred_check
    _
  $region19: #{_mega_agg_jit.1} parent=0 // pred_check_branch
    %22 = sbr.rel (0) target = $region21
  $region20: #{_mega_agg_jit.1} parent=0 // pred_region
    _
  $region21: #{_mega_agg_jit.1} parent=0 // pred_fallthru
    _
  // Predicated region
  $region22: #{_mega_agg_jit.1} parent=0 // pred_check
    _
  $region23: #{_mega_agg_jit.1} parent=0 // pred_check_branch
    %24 = sbr.rel (0) target = $region25
  $region24: #{_mega_agg_jit.1} parent=0 // pred_region
    _
  $region25: #{_mega_agg_jit.1} parent=0 // pred_fallthru
    _
  %p25 = scmp.eq.s32.totalorder 0, 0
  // Predicated region
  $region26: #{_mega_agg_jit.1} parent=0 // pred_check
    %p26 = pneg %p25
  $region27: #{_mega_agg_jit.1} parent=0 // pred_check_branch
    %28 = sbr.rel (%p26) target = $region29
  $region28: #{_mega_agg_jit.1} parent=0 // pred_region
    %29 = vst [vmem:[%s6] sm:$0xff] 0.0
    %30 = vst [vmem:[%s6 + $0x8] sm:$0xff] 0.0
    %31 = vst [vmem:[%s6 + $0x10] sm:$0xff] 0.0
    %32 = vst [vmem:[%s6 + $0x18] sm:$0xff] 0.0
    %33 = vst [vmem:[%s6 + $0x20] sm:$0xff] 0.0
    %34 = vst [vmem:[%s6 + $0x28] sm:$0xff] 0.0
    %35 = vst [vmem:[%s6 + $0x30] sm:$0xff] 0.0
    %36 = vst [vmem:[%s6 + $0x38] sm:$0xff] 0.0
    %37 = vst [vmem:[%s6 + $0x40] sm:$0xff] 0.0
    %38 = vst [vmem:[%s6 + $0x48] sm:$0xff] 0.0
    %39 = vst [vmem:[%s6 + $0x50] sm:$0xff] 0.0
    %40 = vst [vmem:[%s6 + $0x58] sm:$0xff] 0.0
    %41 = vst [vmem:[%s6 + $0x60] sm:$0xff] 0.0
    %42 = vst [vmem:[%s6 + $0x68] sm:$0xff] 0.0
    %43 = vst [vmem:[%s6 + $0x70] sm:$0xff] 0.0
    %44 = vst [vmem:[%s6 + $0x78] sm:$0xff] 0.0
  $region29: #{_mega_agg_jit.1} parent=0 // pred_fallthru
    _
  %v45 = vld [vmem:[%s0] sm:$0x1]
  %s46 = smul.u32 0, 128
  %v47 = vlaneseq
  %v48 = vshrl.u32 %v47, 7
  %v49 = vadd.s32 %v48, 8
  %v50 = vadd.s32 %v48, 16
  %v51 = vadd.s32 %v48, 24
  %v52 = vadd.s32 %v48, 32
  %v53 = vadd.s32 %v48, 40
  %v54 = vadd.s32 %v48, 48
  %v55 = vadd.s32 %v48, 56
  %v56 = vadd.s32 %v48, 64
  %v57 = vadd.s32 %v48, 72
  %v58 = vadd.s32 %v48, 80
  %v59 = vadd.s32 %v48, 88
  %v60 = vadd.s32 %v48, 96
  %v61 = vadd.s32 %v48, 104
  %v62 = vadd.s32 %v48, 112
  %v63 = vadd.s32 %v48, 120
  %v64 = vstv %s46
  %v65 = vadd.s32 %v64, %v48
  %v66 = vadd.s32 %v64, %v49
  %v67 = vadd.s32 %v64, %v50
  %v68 = vadd.s32 %v64, %v51
  %v69 = vadd.s32 %v64, %v52
  %v70 = vadd.s32 %v64, %v53
  %v71 = vadd.s32 %v64, %v54
  %v72 = vadd.s32 %v64, %v55
  %v73 = vadd.s32 %v64, %v56
  %v74 = vadd.s32 %v64, %v57
  %v75 = vadd.s32 %v64, %v58
  %v76 = vadd.s32 %v64, %v59
  %v77 = vadd.s32 %v64, %v60
  %v78 = vadd.s32 %v64, %v61
  %v79 = vadd.s32 %v64, %v62
  %v80 = vadd.s32 %v64, %v63
  %v81 = vperm.slane %v45, 0
  %vm82 = vcmp.eq.s32.totalorder %v81, %v65
  %vm83 = vcmp.eq.s32.totalorder %v81, %v66
  %vm84 = vcmp.eq.s32.totalorder %v81, %v67
  %vm85 = vcmp.eq.s32.totalorder %v81, %v68
  %vm86 = vcmp.eq.s32.totalorder %v81, %v69
  %vm87 = vcmp.eq.s32.totalorder %v81, %v70
  %vm88 = vcmp.eq.s32.totalorder %v81, %v71
  %vm89 = vcmp.eq.s32.totalorder %v81, %v72
  %vm90 = vcmp.eq.s32.totalorder %v81, %v73
  %vm91 = vcmp.eq.s32.totalorder %v81, %v74
  %vm92 = vcmp.eq.s32.totalorder %v81, %v75
  %vm93 = vcmp.eq.s32.totalorder %v81, %v76
  %vm94 = vcmp.eq.s32.totalorder %v81, %v77
  %vm95 = vcmp.eq.s32.totalorder %v81, %v78
  %vm96 = vcmp.eq.s32.totalorder %v81, %v79
  %vm97 = vcmp.eq.s32.totalorder %v81, %v80
  %v98 = vsel %vm82, 1.0, 0.0
  %v99 = vsel %vm83, 1.0, 0.0
  %v100 = vsel %vm84, 1.0, 0.0
  %v101 = vsel %vm85, 1.0, 0.0
  %v102 = vsel %vm86, 1.0, 0.0
  %v103 = vsel %vm87, 1.0, 0.0
  %v104 = vsel %vm88, 1.0, 0.0
  %v105 = vsel %vm89, 1.0, 0.0
  %v106 = vsel %vm90, 1.0, 0.0
  %v107 = vsel %vm91, 1.0, 0.0
  %v108 = vsel %vm92, 1.0, 0.0
  %v109 = vsel %vm93, 1.0, 0.0
  %v110 = vsel %vm94, 1.0, 0.0
  %v111 = vsel %vm95, 1.0, 0.0
  %v112 = vsel %vm96, 1.0, 0.0
  %v113 = vsel %vm97, 1.0, 0.0
  %v114 = vpack.c.bf16 %v99, %v98
  %v115 = vpack.c.bf16 %v101, %v100
  %v116 = vpack.c.bf16 %v103, %v102
  %v117 = vpack.c.bf16 %v105, %v104
  %v118 = vpack.c.bf16 %v107, %v106
  %v119 = vpack.c.bf16 %v109, %v108
  %v120 = vpack.c.bf16 %v111, %v110
  %v121 = vpack.c.bf16 %v113, %v112
  %v122 = vld [vmem:[%s6] sm:$0xff]
  %v123 = vld [vmem:[%s6 + $0x8] sm:$0xff]
  %v124 = vld [vmem:[%s6 + $0x10] sm:$0xff]
  %v125 = vld [vmem:[%s6 + $0x18] sm:$0xff]
  %v126 = vld [vmem:[%s6 + $0x20] sm:$0xff]
  %v127 = vld [vmem:[%s6 + $0x28] sm:$0xff]
  %v128 = vld [vmem:[%s6 + $0x30] sm:$0xff]
  %v129 = vld [vmem:[%s6 + $0x38] sm:$0xff]
  %v130 = vld [vmem:[%s6 + $0x40] sm:$0xff]
  %v131 = vld [vmem:[%s6 + $0x48] sm:$0xff]
  %v132 = vld [vmem:[%s6 + $0x50] sm:$0xff]
  %v133 = vld [vmem:[%s6 + $0x58] sm:$0xff]
  %v134 = vld [vmem:[%s6 + $0x60] sm:$0xff]
  %v135 = vld [vmem:[%s6 + $0x68] sm:$0xff]
  %v136 = vld [vmem:[%s6 + $0x70] sm:$0xff]
  %v137 = vld [vmem:[%s6 + $0x78] sm:$0xff]
  %v138 = vld [vmem:[%s1] sm:$0xf]
  %v139 = vld [vmem:[%s1 + $0x4] sm:$0xf]
  %v140 = vld [vmem:[%s1 + $0x8] sm:$0xf]
  %v141 = vld [vmem:[%s1 + $0xc] sm:$0xf]
  %v142 = vld [vmem:[%s1 + $0x10] sm:$0xf]
  %v143 = vld [vmem:[%s1 + $0x14] sm:$0xf]
  %v144 = vld [vmem:[%s1 + $0x18] sm:$0xf]
  %v145 = vld [vmem:[%s1 + $0x1c] sm:$0xf]
  %v146 = vld [vmem:[%s1 + $0x20] sm:$0xf]
  %v147 = vld [vmem:[%s1 + $0x24] sm:$0xf]
  %v148 = vld [vmem:[%s1 + $0x28] sm:$0xf]
  %v149 = vld [vmem:[%s1 + $0x2c] sm:$0xf]
  %v150 = vld [vmem:[%s1 + $0x30] sm:$0xf]
  %v151 = vld [vmem:[%s1 + $0x34] sm:$0xf]
  %v152 = vld [vmem:[%s1 + $0x38] sm:$0xf]
  %v153 = vld [vmem:[%s1 + $0x3c] sm:$0xf]
  %v170 = vunpack.c.l.b16 %v138
  %v171 = vunpack.c.l.b16 %v139
  %v172 = vunpack.c.l.b16 %v140
  %v173 = vunpack.c.l.b16 %v141
  %v174 = vunpack.c.l.b16 %v142
  %v175 = vunpack.c.l.b16 %v143
  %v176 = vunpack.c.l.b16 %v144
  %v177 = vunpack.c.l.b16 %v145
  %v178 = vunpack.c.l.b16 %v146
  %v179 = vunpack.c.l.b16 %v147
  %v180 = vunpack.c.l.b16 %v148
  %v181 = vunpack.c.l.b16 %v149
  %v182 = vunpack.c.l.b16 %v150
  %v183 = vunpack.c.l.b16 %v151
  %v184 = vunpack.c.l.b16 %v152
  %v185 = vunpack.c.l.b16 %v153
  %v186 = vpack.c.b16 %v171, %v170
  %v187 = vpack.c.b16 %v173, %v172
  %v188 = vpack.c.b16 %v175, %v174
  %v189 = vpack.c.b16 %v177, %v176
  %v190 = vpack.c.b16 %v179, %v178
  %v191 = vpack.c.b16 %v181, %v180
  %v192 = vpack.c.b16 %v183, %v182
  %v193 = vpack.c.b16 %v185, %v184
  %202 = vmatpush.bf16.msra.mxu0 %v193
  %203 = vmatpush.bf16.msra.mxu0 %v192
  %204 = vmatpush.bf16.msra.mxu0 %v191
  %205 = vmatpush.bf16.msra.mxu0 %v190
  %206 = vmatpush.bf16.msra.mxu0 %v189
  %207 = vmatpush.bf16.msra.mxu0 %v188
  %208 = vmatpush.bf16.msra.mxu0 %v187
  %209 = vmatpush.bf16.msra.mxu0 %v186
  %210 = vmatmul.bf16.gmra.mxu0 %v114
  %v211 = vpop.f32.mrf.mxu0
  %v212 = vadd.f32 0.0, %v211
  %v213 = vpop.f32.mrf.mxu0
  %v214 = vadd.f32 0.0, %v213
  %215 = vmatmul.bf16.gmra.mxu0 %v115
  %v216 = vpop.f32.mrf.mxu0
  %v217 = vadd.f32 0.0, %v216
  %v218 = vpop.f32.mrf.mxu0
  %v219 = vadd.f32 0.0, %v218
  %220 = vmatmul.bf16.gmra.mxu0 %v116
  %v221 = vpop.f32.mrf.mxu0
  %v222 = vadd.f32 0.0, %v221
  %v223 = vpop.f32.mrf.mxu0
  %v224 = vadd.f32 0.0, %v223
  %225 = vmatmul.bf16.gmra.mxu0 %v117
  %v226 = vpop.f32.mrf.mxu0
  %v227 = vadd.f32 0.0, %v226
  %v228 = vpop.f32.mrf.mxu0
  %v229 = vadd.f32 0.0, %v228
  %230 = vmatmul.bf16.gmra.mxu0 %v118
  %v231 = vpop.f32.mrf.mxu0
  %v232 = vadd.f32 0.0, %v231
  %v233 = vpop.f32.mrf.mxu0
  %v234 = vadd.f32 0.0, %v233
  %235 = vmatmul.bf16.gmra.mxu0 %v119
  %v236 = vpop.f32.mrf.mxu0
  %v237 = vadd.f32 0.0, %v236
  %v238 = vpop.f32.mrf.mxu0
  %v239 = vadd.f32 0.0, %v238
  %240 = vmatmul.bf16.gmra.mxu0 %v120
  %v241 = vpop.f32.mrf.mxu0
  %v242 = vadd.f32 0.0, %v241
  %v243 = vpop.f32.mrf.mxu0
  %v244 = vadd.f32 0.0, %v243
  %245 = vmatmul.bf16.gmra.mxu0 %v121
  %v246 = vpop.f32.mrf.mxu0
  %v247 = vadd.f32 0.0, %v246
  %v248 = vpop.f32.mrf.mxu0
  %v249 = vadd.f32 0.0, %v248
  %250 = vdwg.mxu0
  %v251 = vadd.f32 %v122, %v212
  %v252 = vadd.f32 %v123, %v214
  %v253 = vadd.f32 %v124, %v217
  %v254 = vadd.f32 %v125, %v219
  %v255 = vadd.f32 %v126, %v222
  %v256 = vadd.f32 %v127, %v224
  %v257 = vadd.f32 %v128, %v227
  %v258 = vadd.f32 %v129, %v229
  %v259 = vadd.f32 %v130, %v232
  %v260 = vadd.f32 %v131, %v234
  %v261 = vadd.f32 %v132, %v237
  %v262 = vadd.f32 %v133, %v239
  %v263 = vadd.f32 %v134, %v242
  %v264 = vadd.f32 %v135, %v244
  %v265 = vadd.f32 %v136, %v247
  %v266 = vadd.f32 %v137, %v249
  %267 = vst [vmem:[%s6] sm:$0xff] %v251
  %268 = vst [vmem:[%s6 + $0x8] sm:$0xff] %v252
  %269 = vst [vmem:[%s6 + $0x10] sm:$0xff] %v253
  %270 = vst [vmem:[%s6 + $0x18] sm:$0xff] %v254
  %271 = vst [vmem:[%s6 + $0x20] sm:$0xff] %v255
  %272 = vst [vmem:[%s6 + $0x28] sm:$0xff] %v256
  %273 = vst [vmem:[%s6 + $0x30] sm:$0xff] %v257
  %274 = vst [vmem:[%s6 + $0x38] sm:$0xff] %v258
  %275 = vst [vmem:[%s6 + $0x40] sm:$0xff] %v259
  %276 = vst [vmem:[%s6 + $0x48] sm:$0xff] %v260
  %277 = vst [vmem:[%s6 + $0x50] sm:$0xff] %v261
  %278 = vst [vmem:[%s6 + $0x58] sm:$0xff] %v262
  %279 = vst [vmem:[%s6 + $0x60] sm:$0xff] %v263
  %280 = vst [vmem:[%s6 + $0x68] sm:$0xff] %v264
  %281 = vst [vmem:[%s6 + $0x70] sm:$0xff] %v265
  %282 = vst [vmem:[%s6 + $0x78] sm:$0xff] %v266
  // Predicated region
  $region30: #{_mega_agg_jit.1} parent=0 // pred_check
    %p283 = pneg %p25
  $region31: #{_mega_agg_jit.1} parent=0 // pred_check_branch
    %285 = sbr.rel (%p283) target = $region33
  $region32: #{_mega_agg_jit.1} parent=0 // pred_region
    %v286 = vld [vmem:[%s6] sm:$0xff]
    %v287 = vld [vmem:[%s6 + $0x8] sm:$0xff]
    %v288 = vld [vmem:[%s6 + $0x10] sm:$0xff]
    %v289 = vld [vmem:[%s6 + $0x18] sm:$0xff]
    %v290 = vld [vmem:[%s6 + $0x20] sm:$0xff]
    %v291 = vld [vmem:[%s6 + $0x28] sm:$0xff]
    %v292 = vld [vmem:[%s6 + $0x30] sm:$0xff]
    %v293 = vld [vmem:[%s6 + $0x38] sm:$0xff]
    %v294 = vld [vmem:[%s6 + $0x40] sm:$0xff]
    %v295 = vld [vmem:[%s6 + $0x48] sm:$0xff]
    %v296 = vld [vmem:[%s6 + $0x50] sm:$0xff]
    %v297 = vld [vmem:[%s6 + $0x58] sm:$0xff]
    %v298 = vld [vmem:[%s6 + $0x60] sm:$0xff]
    %v299 = vld [vmem:[%s6 + $0x68] sm:$0xff]
    %v300 = vld [vmem:[%s6 + $0x70] sm:$0xff]
    %v301 = vld [vmem:[%s6 + $0x78] sm:$0xff]
    %v302 = vld [vmem:[%s2] sm:$0xff]
    %v303 = vld [vmem:[%s2 + $0x8] sm:$0xff]
    %v304 = vld [vmem:[%s2 + $0x10] sm:$0xff]
    %v305 = vld [vmem:[%s2 + $0x18] sm:$0xff]
    %v306 = vld [vmem:[%s2 + $0x20] sm:$0xff]
    %v307 = vld [vmem:[%s2 + $0x28] sm:$0xff]
    %v308 = vld [vmem:[%s2 + $0x30] sm:$0xff]
    %v309 = vld [vmem:[%s2 + $0x38] sm:$0xff]
    %v310 = vld [vmem:[%s2 + $0x40] sm:$0xff]
    %v311 = vld [vmem:[%s2 + $0x48] sm:$0xff]
    %v312 = vld [vmem:[%s2 + $0x50] sm:$0xff]
    %v313 = vld [vmem:[%s2 + $0x58] sm:$0xff]
    %v314 = vld [vmem:[%s2 + $0x60] sm:$0xff]
    %v315 = vld [vmem:[%s2 + $0x68] sm:$0xff]
    %v316 = vld [vmem:[%s2 + $0x70] sm:$0xff]
    %v317 = vld [vmem:[%s2 + $0x78] sm:$0xff]
    %v318 = vld [vmem:[%s3] sm:$0x1]
    %v320 = vperm.slane %v318, 0
    %322 = vmatpush.msra.mxu0 %v317
    %323 = vmatpush.msra.mxu0 %v316
    %324 = vmatpush.msra.mxu0 %v315
    %325 = vmatpush.msra.mxu0 %v314
    %326 = vmatpush.msra.mxu0 %v313
    %327 = vmatpush.msra.mxu0 %v312
    %328 = vmatpush.msra.mxu0 %v311
    %329 = vmatpush.msra.mxu0 %v310
    %330 = vmatpush.msra.mxu0 %v309
    %331 = vmatpush.msra.mxu0 %v308
    %332 = vmatpush.msra.mxu0 %v307
    %333 = vmatpush.msra.mxu0 %v306
    %334 = vmatpush.msra.mxu0 %v305
    %335 = vmatpush.msra.mxu0 %v304
    %336 = vmatpush.msra.mxu0 %v303
    %337 = vmatpush.msra.mxu0 %v302
    %338 = vmatmul.f32.gmra.mxu0 %v286
    %v339 = vpop.f32.mrf.mxu0
    %v340 = vadd.f32 %v320, %v339
    %341 = vmatmul.f32.gmra.mxu0 %v287
    %v342 = vpop.f32.mrf.mxu0
    %v343 = vadd.f32 %v320, %v342
    %344 = vmatmul.f32.gmra.mxu0 %v288
    %v345 = vpop.f32.mrf.mxu0
    %v346 = vadd.f32 %v320, %v345
    %347 = vmatmul.f32.gmra.mxu0 %v289
    %v348 = vpop.f32.mrf.mxu0
    %v349 = vadd.f32 %v320, %v348
    %350 = vmatmul.f32.gmra.mxu0 %v290
    %v351 = vpop.f32.mrf.mxu0
    %v352 = vadd.f32 %v320, %v351
    %353 = vmatmul.f32.gmra.mxu0 %v291
    %v354 = vpop.f32.mrf.mxu0
    %v355 = vadd.f32 %v320, %v354
    %356 = vmatmul.f32.gmra.mxu0 %v292
    %v357 = vpop.f32.mrf.mxu0
    %v358 = vadd.f32 %v320, %v357
    %359 = vmatmul.f32.gmra.mxu0 %v293
    %v360 = vpop.f32.mrf.mxu0
    %v361 = vadd.f32 %v320, %v360
    %362 = vmatmul.f32.gmra.mxu0 %v294
    %v363 = vpop.f32.mrf.mxu0
    %v364 = vadd.f32 %v320, %v363
    %365 = vmatmul.f32.gmra.mxu0 %v295
    %v366 = vpop.f32.mrf.mxu0
    %v367 = vadd.f32 %v320, %v366
    %368 = vmatmul.f32.gmra.mxu0 %v296
    %v369 = vpop.f32.mrf.mxu0
    %v370 = vadd.f32 %v320, %v369
    %371 = vmatmul.f32.gmra.mxu0 %v297
    %v372 = vpop.f32.mrf.mxu0
    %v373 = vadd.f32 %v320, %v372
    %374 = vmatmul.f32.gmra.mxu0 %v298
    %v375 = vpop.f32.mrf.mxu0
    %v376 = vadd.f32 %v320, %v375
    %377 = vmatmul.f32.gmra.mxu0 %v299
    %v378 = vpop.f32.mrf.mxu0
    %v379 = vadd.f32 %v320, %v378
    %380 = vmatmul.f32.gmra.mxu0 %v300
    %v381 = vpop.f32.mrf.mxu0
    %v382 = vadd.f32 %v320, %v381
    %383 = vmatmul.f32.gmra.mxu0 %v301
    %v384 = vpop.f32.mrf.mxu0
    %v385 = vadd.f32 %v320, %v384
    %386 = vdwg.mxu0
    %v387 = vmax.f32 %v340, 0.0
    %v388 = vmax.f32 %v343, 0.0
    %v389 = vmax.f32 %v346, 0.0
    %v390 = vmax.f32 %v349, 0.0
    %v391 = vmax.f32 %v352, 0.0
    %v392 = vmax.f32 %v355, 0.0
    %v393 = vmax.f32 %v358, 0.0
    %v394 = vmax.f32 %v361, 0.0
    %v395 = vmax.f32 %v364, 0.0
    %v396 = vmax.f32 %v367, 0.0
    %v397 = vmax.f32 %v370, 0.0
    %v398 = vmax.f32 %v373, 0.0
    %v399 = vmax.f32 %v376, 0.0
    %v400 = vmax.f32 %v379, 0.0
    %v401 = vmax.f32 %v382, 0.0
    %v402 = vmax.f32 %v385, 0.0
    %v403 = vld [vmem:[%s4] sm:$0xff]
    %v404 = vld [vmem:[%s4 + $0x8] sm:$0xff]
    %v405 = vld [vmem:[%s4 + $0x10] sm:$0xff]
    %v406 = vld [vmem:[%s4 + $0x18] sm:$0xff]
    %v407 = vld [vmem:[%s4 + $0x20] sm:$0xff]
    %v408 = vld [vmem:[%s4 + $0x28] sm:$0xff]
    %v409 = vld [vmem:[%s4 + $0x30] sm:$0xff]
    %v410 = vld [vmem:[%s4 + $0x38] sm:$0xff]
    %v411 = vld [vmem:[%s4 + $0x40] sm:$0xff]
    %v412 = vld [vmem:[%s4 + $0x48] sm:$0xff]
    %v413 = vld [vmem:[%s4 + $0x50] sm:$0xff]
    %v414 = vld [vmem:[%s4 + $0x58] sm:$0xff]
    %v415 = vld [vmem:[%s4 + $0x60] sm:$0xff]
    %v416 = vld [vmem:[%s4 + $0x68] sm:$0xff]
    %v417 = vld [vmem:[%s4 + $0x70] sm:$0xff]
    %v418 = vld [vmem:[%s4 + $0x78] sm:$0xff]
    %v419 = vld [vmem:[%s5] sm:$0x1]
    %v421 = vperm.slane %v419, 0
    %423 = vmatpush.msra.mxu0 %v418
    %424 = vmatpush.msra.mxu0 %v417
    %425 = vmatpush.msra.mxu0 %v416
    %426 = vmatpush.msra.mxu0 %v415
    %427 = vmatpush.msra.mxu0 %v414
    %428 = vmatpush.msra.mxu0 %v413
    %429 = vmatpush.msra.mxu0 %v412
    %430 = vmatpush.msra.mxu0 %v411
    %431 = vmatpush.msra.mxu0 %v410
    %432 = vmatpush.msra.mxu0 %v409
    %433 = vmatpush.msra.mxu0 %v408
    %434 = vmatpush.msra.mxu0 %v407
    %435 = vmatpush.msra.mxu0 %v406
    %436 = vmatpush.msra.mxu0 %v405
    %437 = vmatpush.msra.mxu0 %v404
    %438 = vmatpush.msra.mxu0 %v403
    %439 = vmatmul.f32.gmra.mxu0 %v387
    %v440 = vpop.f32.mrf.mxu0
    %v441 = vadd.f32 %v421, %v440
    %442 = vmatmul.f32.gmra.mxu0 %v388
    %v443 = vpop.f32.mrf.mxu0
    %v444 = vadd.f32 %v421, %v443
    %445 = vmatmul.f32.gmra.mxu0 %v389
    %v446 = vpop.f32.mrf.mxu0
    %v447 = vadd.f32 %v421, %v446
    %448 = vmatmul.f32.gmra.mxu0 %v390
    %v449 = vpop.f32.mrf.mxu0
    %v450 = vadd.f32 %v421, %v449
    %451 = vmatmul.f32.gmra.mxu0 %v391
    %v452 = vpop.f32.mrf.mxu0
    %v453 = vadd.f32 %v421, %v452
    %454 = vmatmul.f32.gmra.mxu0 %v392
    %v455 = vpop.f32.mrf.mxu0
    %v456 = vadd.f32 %v421, %v455
    %457 = vmatmul.f32.gmra.mxu0 %v393
    %v458 = vpop.f32.mrf.mxu0
    %v459 = vadd.f32 %v421, %v458
    %460 = vmatmul.f32.gmra.mxu0 %v394
    %v461 = vpop.f32.mrf.mxu0
    %v462 = vadd.f32 %v421, %v461
    %463 = vmatmul.f32.gmra.mxu0 %v395
    %v464 = vpop.f32.mrf.mxu0
    %v465 = vadd.f32 %v421, %v464
    %466 = vmatmul.f32.gmra.mxu0 %v396
    %v467 = vpop.f32.mrf.mxu0
    %v468 = vadd.f32 %v421, %v467
    %469 = vmatmul.f32.gmra.mxu0 %v397
    %v470 = vpop.f32.mrf.mxu0
    %v471 = vadd.f32 %v421, %v470
    %472 = vmatmul.f32.gmra.mxu0 %v398
    %v473 = vpop.f32.mrf.mxu0
    %v474 = vadd.f32 %v421, %v473
    %475 = vmatmul.f32.gmra.mxu0 %v399
    %v476 = vpop.f32.mrf.mxu0
    %v477 = vadd.f32 %v421, %v476
    %478 = vmatmul.f32.gmra.mxu0 %v400
    %v479 = vpop.f32.mrf.mxu0
    %v480 = vadd.f32 %v421, %v479
    %481 = vmatmul.f32.gmra.mxu0 %v401
    %v482 = vpop.f32.mrf.mxu0
    %v483 = vadd.f32 %v421, %v482
    %484 = vmatmul.f32.gmra.mxu0 %v402
    %v485 = vpop.f32.mrf.mxu0
    %v486 = vadd.f32 %v421, %v485
    %487 = vdwg.mxu0
    %488 = vst [vmem:[%s7] sm:$0xff] %v441
    %489 = vst [vmem:[%s7 + $0x8] sm:$0xff] %v444
    %490 = vst [vmem:[%s7 + $0x10] sm:$0xff] %v447
    %491 = vst [vmem:[%s7 + $0x18] sm:$0xff] %v450
    %492 = vst [vmem:[%s7 + $0x20] sm:$0xff] %v453
    %493 = vst [vmem:[%s7 + $0x28] sm:$0xff] %v456
    %494 = vst [vmem:[%s7 + $0x30] sm:$0xff] %v459
    %495 = vst [vmem:[%s7 + $0x38] sm:$0xff] %v462
    %496 = vst [vmem:[%s7 + $0x40] sm:$0xff] %v465
    %497 = vst [vmem:[%s7 + $0x48] sm:$0xff] %v468
    %498 = vst [vmem:[%s7 + $0x50] sm:$0xff] %v471
    %499 = vst [vmem:[%s7 + $0x58] sm:$0xff] %v474
    %500 = vst [vmem:[%s7 + $0x60] sm:$0xff] %v477
    %501 = vst [vmem:[%s7 + $0x68] sm:$0xff] %v480
    %502 = vst [vmem:[%s7 + $0x70] sm:$0xff] %v483
    %503 = vst [vmem:[%s7 + $0x78] sm:$0xff] %v486
  $region33: #{_mega_agg_jit.1} parent=0 // pred_fallthru
    _
  // Predicated region
  $region34: #{_mega_agg_jit.1} parent=0 // pred_check
    _
  $region35: #{_mega_agg_jit.1} parent=0 // pred_check_branch
    %505 = sbr.rel (0) target = $region37
  $region36: #{_mega_agg_jit.1} parent=0 // pred_region
    _
  $region37: #{_mega_agg_jit.1} parent=0 // pred_fallthru
    _
  // Predicated region
  $region38: #{_mega_agg_jit.1} parent=0 // pred_check
    _
  $region39: #{_mega_agg_jit.1} parent=0 // pred_check_branch
    %507 = sbr.rel (0) target = $region41
  $region40: #{_mega_agg_jit.1} parent=0 // pred_region
    _
  $region41: #{_mega_agg_jit.1} parent=0 // pred_fallthru
    _
  // Predicated region
  $region42: #{_mega_agg_jit.1} parent=0 // pred_check
    _
  $region43: #{_mega_agg_jit.1} parent=0 // pred_check_branch
    %509 = sbr.rel (0) target = $region45
  $region44: #{_mega_agg_jit.1} parent=0 // pred_region
    _
  $region45: #{_mega_agg_jit.1} parent=0 // pred_fallthru
    _
  // Predicated region
  $region46: #{_mega_agg_jit.1} parent=0 // pred_check
    _
  $region47: #{_mega_agg_jit.1} parent=0 // pred_check_branch
    %511 = sbr.rel (0) target = $region49
  $region48: #{_mega_agg_jit.1} parent=0 // pred_region
    _
  $region49: #{_mega_agg_jit.1} parent=0 // pred_fallthru
    _

</llo_original>
